<compile_context>
chip_gen: v7x
topology: tpu7x:2x2x1
jax: 0.10.0
libtpu: 0.0.40
codegen_flags: <defaults>
</compile_context>

<pallas_src>
import functools

import jax
import jax.numpy as jnp
from jax.experimental import pallas as pl
from jax.experimental.pallas import tpu as pltpu


def _round_up(v, m):
    return ((v + m - 1) // m) * m


def _lsce_kernel(x_ref, tgt_ref, out_ref, *,
                 confidence, smoothing, n_rows, n_classes, tile_n):
    # x_ref:   (tile_n, C)   logits tile in VMEM (native dtype, upcast here)
    # tgt_ref: (tile_n, 1)   int32 class indices tile
    # out_ref: (1, 8, 128)   f32 lane-dense slab holding this tile's partial sum
    i = pl.program_id(0)

    x = x_ref[...].astype(jnp.float32)                     # (tile_n, C)
    tgt = tgt_ref[...]                                     # (tile_n, 1) int32

    # Row-wise logsumexp; no (tile_n, C) logprobs materialization.
    m = jnp.max(x, axis=-1, keepdims=True)                 # (tile_n, 1)
    s = jnp.sum(jnp.exp(x - m), axis=-1, keepdims=True)    # (tile_n, 1)
    lse = jnp.log(s) + m                                   # (tile_n, 1)

    # Fused weighted reduction.  With confidence + smoothing == 1:
    #   conf*(lse - x_t) + smooth*(lse - mean_c(x))
    #     = lse - sum_c(x * (smooth/C + conf*[c == tgt]))
    cls = jax.lax.broadcasted_iota(jnp.int32, x.shape, 1)  # (tile_n, C)
    base = smoothing / n_classes
    w = jnp.where(cls == tgt, confidence + base, base)
    wx = jnp.sum(x * w, axis=-1, keepdims=True)            # (tile_n, 1)

    loss = lse - wx                                        # (tile_n, 1)

    # Mask rows of the last (partial) tile; static no-op when N % tile_n == 0.
    if n_rows % tile_n != 0:
        row = i * tile_n + jax.lax.broadcasted_iota(jnp.int32, (tile_n, 1), 0)
        loss = jnp.where(row < n_rows, loss, 0.0)

    partial = jnp.sum(loss) * (1.0 / n_rows)               # pre-scaled by 1/N
    out_ref[...] = jnp.broadcast_to(partial, out_ref.shape)


def label_smoothing_cross_entropy(x, target, *, smooth_factor=0.1,
                                  tile_n=None,
                                  max_tile_n=1024,
                                  vmem_budget_bytes=28 * 1024 * 1024,
                                  vmem_limit_bytes=48 * 1024 * 1024):
    """Forward pass of GPULabelSmoothingCrossEntropy.

    x:      [N, C] float logits (any float dtype; cast to f32 inside the kernel)
    target: [N]    integer class indices
    returns scalar float32 mean loss
    """
    n, c = x.shape
    confidence = 1.0 - smooth_factor
    tgt = target.astype(jnp.int32).reshape(n, 1)

    itemsize = jnp.dtype(x.dtype).itemsize
    # Sublane packing of the input dtype: f32 -> 8, bf16 -> 16, int8/fp8 -> 32.
    packing = 8 * max(1, 4 // itemsize)

    if tile_n is None:
        # Per grid step: 2x double-buffered input tile (native dtype) plus ~4
        # f32-sized in-kernel temporaries (upcast copy, exp, weight, product).
        # Capped: >=512-row tiles already keep the HBM pipeline busy; larger
        # only adds VMEM / vreg pressure.
        bytes_per_row = c * (2 * itemsize + 4 * 4)
        rows = max(packing, vmem_budget_bytes // bytes_per_row)
        rows = max(packing, (rows // packing) * packing)
        rows = min(rows, max_tile_n)
        tile_n = min(rows, _round_up(n, packing))
    num_tiles = pl.cdiv(n, tile_n)

    kernel = functools.partial(
        _lsce_kernel,
        confidence=confidence,
        smoothing=smooth_factor,
        n_rows=n,
        n_classes=c,
        tile_n=tile_n,
    )

    partials = pl.pallas_call(
        kernel,
        out_shape=jax.ShapeDtypeStruct((num_tiles, 8, 128), jnp.float32),
        grid_spec=pltpu.PrefetchScalarGridSpec(
            num_scalar_prefetch=0,
            grid=(num_tiles,),
            in_specs=[
                pl.BlockSpec((tile_n, c), lambda i: (i, 0)),
                pl.BlockSpec((tile_n, 1), lambda i: (i, 0)),
            ],
            out_specs=pl.BlockSpec((1, 8, 128), lambda i: (i, 0, 0)),
        ),
        compiler_params=pltpu.CompilerParams(
            dimension_semantics=("parallel",),
            vmem_limit_bytes=vmem_limit_bytes,
        ),
    )(x, tgt)

    # Tiny final reduce over per-tile partial sums (each already scaled by 1/N).
    return jnp.sum(partials[:, 0, 0])


def _reference(x, target, smooth_factor):
    confidence = 1.0 - smooth_factor
    logprobs = jax.nn.log_softmax(x.astype(jnp.float32), axis=-1)
    nll = -jnp.take_along_axis(
        logprobs, target.astype(jnp.int32)[:, None], axis=-1
    )[:, 0]
    smooth = -jnp.mean(logprobs, axis=-1)
    return jnp.mean(confidence * nll + smooth_factor * smooth)


if __name__ == "__main__":
    key = jax.random.PRNGKey(0)
    smooth_factor = 0.1
    k1x, k1t, k2x, k2t, k3x, k3t = jax.random.split(key, 6)

    # Case 1: single-tile f32 (batch=8, classes=128).
    x1 = jax.random.normal(k1x, (8, 128), dtype=jnp.float32)
    t1 = jax.random.randint(k1t, (8,), 0, 128, dtype=jnp.int32)
    loss1 = jax.block_until_ready(
        label_smoothing_cross_entropy(x1, t1, smooth_factor=smooth_factor))
    ref1 = _reference(x1, t1, smooth_factor)
    assert jnp.allclose(loss1, ref1, atol=1e-5, rtol=1e-5), (loss1, ref1)

    # Case 2: multi-tile parallel grid with a partial last tile
    # (batch=20, classes=256, tile_n=8 -> 3 tiles, 4 masked rows).
    x2 = jax.random.normal(k2x, (20, 256), dtype=jnp.float32)
    t2 = jax.random.randint(k2t, (20,), 0, 256, dtype=jnp.int32)
    loss2 = jax.block_until_ready(
        label_smoothing_cross_entropy(
            x2, t2, smooth_factor=smooth_factor, tile_n=8))
    ref2 = _reference(x2, t2, smooth_factor)
    assert jnp.allclose(loss2, ref2, atol=1e-5, rtol=1e-5), (loss2, ref2)

    # Case 3: bf16 logits (exercises dtype-aware tile sizing / sublane packing).
    x3 = jax.random.normal(k3x, (16, 384), dtype=jnp.bfloat16)
    t3 = jax.random.randint(k3t, (16,), 0, 384, dtype=jnp.int32)
    loss3 = jax.block_until_ready(
        label_smoothing_cross_entropy(x3, t3, smooth_factor=smooth_factor))
    ref3 = _reference(x3, t3, smooth_factor)
    assert jnp.allclose(loss3, ref3, atol=1e-4, rtol=1e-4), (loss3, ref3)

    print("KERNEL_OK")
</pallas_src>

<mosaic_0001>
module attributes {stable_mosaic.version = 11 : i64} {
  func.func @_lsce_kernel(%arg0: i32, %arg1: memref<8x128xf32, #tpu.memory_space<vmem>>, %arg2: memref<8x1xi32, #tpu.memory_space<vmem>>, %arg3: memref<1x8x128xf32, #tpu.memory_space<vmem>>) attributes {dimension_semantics = [#tpu.dimension_semantics<parallel>], iteration_bounds = array<i64: 1>, scalar_prefetch = 0 : i64, scratch_operands = 0 : i64, tpu.core_type = #tpu.core_type<tc>, window_params = [{transform_indices = @transform_0, window_bounds = array<i64: 8, 128>}, {transform_indices = @transform_1, window_bounds = array<i64: 8, 1>}, {transform_indices = @transform_2, window_bounds = array<i64: 1, 8, 128>}]} {
    %c0 = arith.constant 0 : index
    %c0_0 = arith.constant 0 : index
    %0 = vector.load %arg1[%c0, %c0_0] : memref<8x128xf32, #tpu.memory_space<vmem>>, vector<8x128xf32>
    %c0_1 = arith.constant 0 : index
    %c0_2 = arith.constant 0 : index
    %1 = vector.load %arg2[%c0_1, %c0_2] : memref<8x1xi32, #tpu.memory_space<vmem>>, vector<8x1xi32>
    %cst = arith.constant dense<0xFF800000> : vector<8xf32>
    %2 = vector.multi_reduction <maximumf>, %0, %cst [1] : vector<8x128xf32> to vector<8xf32>
    %3 = vector.shape_cast %2 : vector<8xf32> to vector<8x1xf32>
    %4 = vector.broadcast %3 : vector<8x1xf32> to vector<8x128xf32>
    %5 = arith.subf %0, %4 : vector<8x128xf32>
    %6 = math.exp %5 : vector<8x128xf32>
    %cst_3 = arith.constant dense<0.000000e+00> : vector<8xf32>
    %7 = vector.multi_reduction <add>, %6, %cst_3 [1] : vector<8x128xf32> to vector<8xf32>
    %8 = vector.shape_cast %7 : vector<8xf32> to vector<8x1xf32>
    %9 = math.log %8 : vector<8x1xf32>
    %10 = arith.addf %9, %3 : vector<8x1xf32>
    %11 = tpu.iota {dimensions = array<i32: 1>} : vector<8x128xi32>
    %12 = vector.broadcast %1 : vector<8x1xi32> to vector<8x128xi32>
    %13 = arith.cmpi eq, %11, %12 : vector<8x128xi32>
    %cst_4 = arith.constant 0.900781273 : f32
    %cst_5 = arith.constant 7.812500e-04 : f32
    %14 = vector.broadcast %cst_4 : f32 to vector<8x128xf32>
    %15 = vector.broadcast %cst_5 : f32 to vector<8x128xf32>
    %16 = arith.select %13, %14, %15 : vector<8x128xi1>, vector<8x128xf32>
    %17 = arith.mulf %0, %16 : vector<8x128xf32>
    %cst_6 = arith.constant dense<0.000000e+00> : vector<8xf32>
    %18 = vector.multi_reduction <add>, %17, %cst_6 [1] : vector<8x128xf32> to vector<8xf32>
    %19 = vector.shape_cast %18 : vector<8xf32> to vector<8x1xf32>
    %20 = arith.subf %10, %19 : vector<8x1xf32>
    %21 = vector.shape_cast %20 : vector<8x1xf32> to vector<1x8x1xf32>
    %cst_7 = arith.constant dense<0.000000e+00> : vector<1xf32>
    %22 = vector.multi_reduction <add>, %21, %cst_7 [1, 2] : vector<1x8x1xf32> to vector<1xf32>
    %23 = vector.shape_cast %22 : vector<1xf32> to vector<1x1x1xf32>
    %24 = vector.extract %23[0, 0, 0] : f32 from vector<1x1x1xf32>
    %cst_8 = arith.constant 1.250000e-01 : f32
    %25 = arith.mulf %24, %cst_8 : f32
    %26 = vector.broadcast %25 : f32 to vector<1x8x128xf32>
    %c0_9 = arith.constant 0 : index
    %c0_10 = arith.constant 0 : index
    %c0_11 = arith.constant 0 : index
    %27 = vector.load %arg3[%c0_9, %c0_10, %c0_11] : memref<1x8x128xf32, #tpu.memory_space<vmem>>, vector<1x8x128xf32>
    tpu.vector_store %arg3[%c0_9, %c0_10, %c0_11], %26 {strides = array<i32>} : memref<1x8x128xf32, #tpu.memory_space<vmem>>, vector<1x8x128xf32>,
    return
  }
  func.func @transform_0(%arg0: i32) -> (i32, i32) {
    %c0_i32 = arith.constant 0 : i32
    %c0_i32_0 = arith.constant 0 : i32
    return %arg0, %c0_i32 : i32, i32
  }
  func.func @transform_1(%arg0: i32) -> (i32, i32) {
    %c0_i32 = arith.constant 0 : i32
    %c0_i32_0 = arith.constant 0 : i32
    return %arg0, %c0_i32 : i32, i32
  }
  func.func @transform_2(%arg0: i32) -> (i32, i32, i32) {
    %c0_i32 = arith.constant 0 : i32
    %c0_i32_0 = arith.constant 0 : i32
    %c0_i32_1 = arith.constant 0 : i32
    return %arg0, %c0_i32, %c0_i32_0 : i32, i32, i32
  }
}

</mosaic_0001>

<llo_original>
// kernel: tpu_custom_call.1
$region0: #{tpu_custom_call.1}
  #allocation0 [shape = 'u32[]', space=smem, size = 0x4, offset = 0x4, fixed_abs, tag = 'smem constant byte address 0x4 - core index']
  #allocation1 [shape = 'u32[144,128]{1,0:T(1,128)}', space=vmem, size = 0x12000, scoped, tag = 'internal scratch']
  %s0 = inlined_call_operand.vmem [shape: f32[8,128], index: 0, kind: input, shape index: {}]
  %s1 = inlined_call_operand.vmem [shape: s32[8,1], index: 1, kind: input, shape index: {}]
  %s2 = inlined_call_operand.hbm [shape: f32[1,8,128], index: 2, kind: output, shape index: {}]
  %s3 = sld [smem:[#allocation0]]
  $region18: #{tpu_custom_call.1} parent=0
    _
  %s5 = ssub.s32 1, %s3
  %s6 = scalar_select 0, %s5, %s3
  $region1: #{tpu_custom_call.1} parent=0
    #allocation2 [shape = 'u8[4096]{0}', space=vmem, size = 0x1000, scoped, tag = 'output window, operand 0, single buffered']
    #allocation3 [shape = 's32[1]{0}', space=sflag, size = 0x4, scoped, tag = 'scoped memory for tpu_custom_call.1']
    %7 = vsyncpa [#allocation3], 0
    // Predicated region
    $region2: #{tpu_custom_call.1} parent=1 // pred_check
      _
    $region3: #{tpu_custom_call.1} parent=1 // pred_check_branch
      %9 = sbr.rel (0) target = $region5
    $region4: #{tpu_custom_call.1} parent=1 // pred_region
      _
    $region5: #{tpu_custom_call.1} parent=1 // pred_fallthru
      _
    // Predicated region
    $region6: #{tpu_custom_call.1} parent=1 // pred_check
      _
    $region7: #{tpu_custom_call.1} parent=1 // pred_check_branch
      %11 = sbr.rel (0) target = $region9
    $region8: #{tpu_custom_call.1} parent=1 // pred_region
      _
    $region9: #{tpu_custom_call.1} parent=1 // pred_fallthru
      _
    %v12 = vld [vmem:[%s0] sm:$0xff]
    %v13 = vld [vmem:[%s1] sm:$0xff]
    %14 = vmax.xlane.f32.xlu0 %v12
    %v15 = vpop.xlane.xlu0 %14
    %v16 = vsub.f32 %v12, %v15
    %v17 = vmul.f32 %v16, 1.442695
    %v18 = vpow.pop %v17
    %19 = vadd.xlane.f32.xlu0 %v18
    %v20 = vpop.xlane.xlu0 %19
    %v21 = vlog2.pop %v20
    %v22 = vmul.f32 %v21, 0.6931472
    %v23 = vadd.f32 %v22, %v15
    %v24 = vlaneseq
    %v25 = vand.u32 %v24, 127
    %26 = vset.pattern.permute.xlu0 0
    %27 = vperm.xlu0 %26, %v13
    %v28 = vpop.permute.xlu0 %27
    %vm29 = vcmp.eq.s32.totalorder %v25, %v28
    %v30 = vsel %vm29, 0.9007813, 0.00078125
    %v31 = vmul.f32 %v12, %v30
    %32 = vadd.xlane.f32.xlu0 %v31
    %v33 = vpop.xlane.xlu0 %32
    %v34 = vsub.f32 %v23, %v33
    %vm35 = vcmask 7168
    %v36 = vsel %vm35, %v34, 0.0
    %37 = vadd.xlane.f32.xlu0 %v36
    %v38 = vpop.xlane.xlu0 %37
    %v39 = vrot.slane %v38, 4
    %v40 = vadd.f32 %v38, %v39
    %v41 = vrot.slane %v40, 2
    %v42 = vadd.f32 %v40, %v41
    %v43 = vrot.slane %v42, 1
    %v44 = vadd.f32 %v42, %v43
    %s45 = vtos %v44
    %s46 = smul.f32 %s45, 0.125
    %v47 = vstv %s46
    %48 = vst [vmem:[#allocation2] sm:$0xff] %v47
    // Predicated region
    $region10: #{tpu_custom_call.1} parent=1 // pred_check
      _
    $region11: #{tpu_custom_call.1} parent=1 // pred_check_branch
      %50 = sbr.rel (0) target = $region13
    $region12: #{tpu_custom_call.1} parent=1 // pred_region
      %s52 = ssub.s32 128, 128
      %53 = vsyncadd [#allocation3], %s52
      %s55 = sshll.u32 [#allocation2], 4
      %s56 = int_to_ptr.vmem [resolvable:$true] %s55
      %58 = dma.vmem_to_hbm [thread:$0]  %s56, 128, %s2, [#allocation3]
    $region13: #{tpu_custom_call.1} parent=1 // pred_fallthru
      _
    // Predicated region
    $region14: #{tpu_custom_call.1} parent=1 // pred_check
      _
    $region15: #{tpu_custom_call.1} parent=1 // pred_check_branch
      %60 = sbr.rel (0) target = $region17
    $region16: #{tpu_custom_call.1} parent=1 // pred_region
      %61 = dma.done [#allocation3], 128
    $region17: #{tpu_custom_call.1} parent=1 // pred_fallthru
      _
    %62 = vsyncpa [#allocation3], 1

</llo_original>
